<compile_context>
chip_gen: v6e
topology: v6e:2x2x1
jax: 0.10.0
libtpu: 0.0.40
codegen_flags: <defaults>
</compile_context>

<pallas_src>
import functools

import jax
import jax.numpy as jnp
from jax import lax
from jax.experimental import pallas as pl
from jax.experimental.pallas import tpu as pltpu


def _linear_relu_dropout_kernel(x_ref, w_ref, b_ref, *rest, apply_mask):
    """One out-feature tile of y = dropout(relu(x @ W^T + b)).

    x_ref: (B, K)   activations (cast to bf16 for the MXU)
    w_ref: (tn, K)  weight tile, PyTorch (out, in) layout, bf16
    b_ref: (1, tn)  bias tile, f32
    m_ref: (B, tn)  optional dropout mask, already scaled by 1/keep_prob, f32
    o_ref: (B, tn)  output tile
    """
    if apply_mask:
        m_ref, o_ref = rest
    else:
        (o_ref,) = rest

    x = x_ref[...].astype(jnp.bfloat16)
    w = w_ref[...].astype(jnp.bfloat16)
    # Contract axis 1 of both operands: (B, K) x (tn, K) -> (B, tn).
    # Keeps the output lane-dense on the out-features dim without any
    # wrapper-side transpose of the weight.
    y = lax.dot_general(x, w, (((1,), (1,)), ((), ())),
                        preferred_element_type=jnp.float32)
    y = y + b_ref[...]              # bias broadcast over batch
    y = jnp.maximum(y, 0.0)         # ReLU
    if apply_mask:
        y = y * m_ref[...]          # dropout (mask is 0 or 1/keep_prob)
    o_ref[...] = y.astype(o_ref.dtype)


def layer10_forward(x, w, b, *, training=False, keep_prob=0.5, rng=None, tn=256):
    """x: (B, 512), w: (512, 512) PyTorch (out, in) layout (bf16 ok), b: (512,)."""
    B, K = x.shape
    N = w.shape[0]
    assert w.shape == (N, K) and b.shape == (N,)
    assert N % tn == 0

    b2 = b.reshape(1, N).astype(jnp.float32)

    in_specs = [
        pl.BlockSpec((B, K), lambda j: (0, 0)),    # full activations every step
        pl.BlockSpec((tn, K), lambda j: (j, 0)),   # out-feature rows of W
        pl.BlockSpec((1, tn), lambda j: (0, j)),   # bias tile
    ]
    args = [x, w, b2]

    if training:
        if rng is None:
            rng = jax.random.PRNGKey(0)
        # Correct Bernoulli(keep_prob) mask, pre-scaled by 1/keep_prob.
        # Generated outside the kernel: seed is runtime data (no recompiles)
        # and only ~B*N*4 bytes of extra traffic.
        mask = (jax.random.bernoulli(rng, keep_prob, (B, N)).astype(jnp.float32)
                / keep_prob)
        in_specs.append(pl.BlockSpec((B, tn), lambda j: (0, j)))
        args.append(mask)

    kernel = functools.partial(_linear_relu_dropout_kernel, apply_mask=training)

    return pl.pallas_call(
        kernel,
        out_shape=jax.ShapeDtypeStruct((B, N), x.dtype),
        grid=(N // tn,),
        in_specs=in_specs,
        out_specs=pl.BlockSpec((B, tn), lambda j: (0, j)),
        compiler_params=pltpu.CompilerParams(
            dimension_semantics=("parallel",)),
    )(*args)


if __name__ == "__main__":
    key = jax.random.PRNGKey(0)
    kx, kw, kb, kd = jax.random.split(key, 4)

    B, D = 8, 512
    x = jax.random.normal(kx, (B, D), dtype=jnp.float32)
    # Weight kept in PyTorch (out_features, in_features) layout, stored once
    # as bf16 (halves the dominant HBM->VMEM weight DMA).
    w = (jax.random.normal(kw, (D, D), dtype=jnp.float32)
         * (1.0 / jnp.sqrt(D))).astype(jnp.bfloat16)
    b = jax.random.normal(kb, (D,), dtype=jnp.float32) * 0.01

    # f32 reference on the same bf16-rounded operands the kernel uses.
    xb = x.astype(jnp.bfloat16).astype(jnp.float32)
    wf = w.astype(jnp.float32)
    ref = jnp.maximum(xb @ wf.T + b, 0.0)

    # Eval mode (Dropout is identity) — primary checked path.
    out = jax.block_until_ready(layer10_forward(x, w, b, training=False))
    assert out.shape == (B, D)
    assert jnp.allclose(out, ref, atol=2e-3, rtol=2e-3), "mismatch vs reference"

    # Training mode: Dropout(p=0.5); kept positions are exactly 2x relu(y),
    # dropped positions are exactly zero.
    out_tr = jax.block_until_ready(
        layer10_forward(x, w, b, training=True, keep_prob=0.5, rng=kd))
    ok = jnp.logical_or(out_tr == 0.0,
                        jnp.isclose(out_tr, 2.0 * ref, atol=2e-3, rtol=2e-3))
    assert bool(jnp.all(ok)), "dropout output inconsistent"

    print("KERNEL_OK")
</pallas_src>

<mosaic_0001>
module attributes {stable_mosaic.version = 11 : i64} {
  func.func @_linear_relu_dropout_kernel(%arg0: i32, %arg1: memref<8x512xf32, #tpu.memory_space<vmem>>, %arg2: memref<256x512xbf16, #tpu.memory_space<vmem>>, %arg3: memref<1x256xf32, #tpu.memory_space<vmem>>, %arg4: memref<8x256xf32, #tpu.memory_space<vmem>>) attributes {dimension_semantics = [#tpu.dimension_semantics<parallel>], iteration_bounds = array<i64: 2>, scalar_prefetch = 0 : i64, scratch_operands = 0 : i64, tpu.core_type = #tpu.core_type<tc>, window_params = [{pipeline_mode = #tpu.pipeline_mode<synchronous>, transform_indices = @transform_0, window_bounds = array<i64: 8, 512>}, {transform_indices = @transform_1, window_bounds = array<i64: 256, 512>}, {transform_indices = @transform_2, window_bounds = array<i64: 1, 256>}, {transform_indices = @transform_3, window_bounds = array<i64: 8, 256>}]} {
    %c0 = arith.constant 0 : index
    %c0_0 = arith.constant 0 : index
    %0 = vector.load %arg1[%c0, %c0_0] : memref<8x512xf32, #tpu.memory_space<vmem>>, vector<8x512xf32>
    %1 = arith.truncf %0 : vector<8x512xf32> to vector<8x512xbf16>
    %c0_1 = arith.constant 0 : index
    %c0_2 = arith.constant 0 : index
    %2 = vector.load %arg2[%c0_1, %c0_2] : memref<256x512xbf16, #tpu.memory_space<vmem>>, vector<256x512xbf16>
    %cst = arith.constant dense<0.000000e+00> : vector<8x256xf32>
    %3 = tpu.matmul %1, %2, %cst {dimension_numbers = #tpu.dot_dimension_numbers<[1], [1], [0], [0], [0, 0, 1, 0], [], []>} : vector<8x512xbf16>, vector<256x512xbf16>, vector<8x256xf32> -> vector<8x256xf32>
    %c0_3 = arith.constant 0 : index
    %c0_4 = arith.constant 0 : index
    %4 = vector.load %arg3[%c0_3, %c0_4] : memref<1x256xf32, #tpu.memory_space<vmem>>, vector<1x256xf32>
    %5 = vector.broadcast %4 : vector<1x256xf32> to vector<8x256xf32>
    %6 = arith.addf %3, %5 : vector<8x256xf32>
    %cst_5 = arith.constant 0.000000e+00 : f32
    %7 = vector.broadcast %cst_5 : f32 to vector<8x256xf32>
    %8 = arith.maximumf %6, %7 : vector<8x256xf32>
    %c0_6 = arith.constant 0 : index
    %c0_7 = arith.constant 0 : index
    %9 = vector.load %arg4[%c0_6, %c0_7] : memref<8x256xf32, #tpu.memory_space<vmem>>, vector<8x256xf32>
    tpu.vector_store %arg4[%c0_6, %c0_7], %8 {strides = array<i32>} : memref<8x256xf32, #tpu.memory_space<vmem>>, vector<8x256xf32>,
    return
  }
  func.func @transform_0(%arg0: i32) -> (i32, i32) {
    %c0_i32 = arith.constant 0 : i32
    %c0_i32_0 = arith.constant 0 : i32
    %c0_i32_1 = arith.constant 0 : i32
    return %c0_i32, %c0_i32_0 : i32, i32
  }
  func.func @transform_1(%arg0: i32) -> (i32, i32) {
    %c0_i32 = arith.constant 0 : i32
    %c0_i32_0 = arith.constant 0 : i32
    return %arg0, %c0_i32 : i32, i32
  }
  func.func @transform_2(%arg0: i32) -> (i32, i32) {
    %c0_i32 = arith.constant 0 : i32
    %c0_i32_0 = arith.constant 0 : i32
    return %c0_i32, %arg0 : i32, i32
  }
  func.func @transform_3(%arg0: i32) -> (i32, i32) {
    %c0_i32 = arith.constant 0 : i32
    %c0_i32_0 = arith.constant 0 : i32
    return %c0_i32, %arg0 : i32, i32
  }
}

</mosaic_0001>

<llo_original>
// kernel: tpu_custom_call.1
$region0: #{tpu_custom_call.1}
  #allocation0 [shape = 'u32[]', space=smem, size = 0x4, offset = 0x4, fixed_abs, tag = 'smem constant byte address 0x4 - core index']
  #allocation1 [shape = 'u32[144,128]{1,0:T(1,128)}', space=vmem, size = 0x12000, scoped, tag = 'internal scratch']
  %s0 = inlined_call_operand.hbm [shape: f32[8,512], index: 0, kind: input, shape index: {}]
  %s1 = inlined_call_operand.hbm [shape: bf16[512,512], index: 1, kind: input, shape index: {}]
  %s2 = inlined_call_operand.hbm [shape: f32[1,512], index: 2, kind: input, shape index: {}]
  %s3 = inlined_call_operand.hbm [shape: f32[8,512], index: 3, kind: output, shape index: {}]
  %s4 = sld [smem:[#allocation0]]
  $region57: #{tpu_custom_call.1} parent=0
    _
  %s6 = ssub.s32 1, %s4
  %s7 = scalar_select 0, %s6, %s4
  $region1: #{tpu_custom_call.1} parent=0
    #allocation2 [shape = 'u8[16384]{0}', space=vmem, size = 0x4000, scoped, tag = 'input window, operand 0, single buffered']
    #allocation3 [shape = 's32[2]{0}', space=sflag, size = 0x8, scoped, tag = 'scoped memory for tpu_custom_call.1']
    #allocation4 [shape = 's32[2]{0}', space=sflag, size = 0x8, scoped, tag = 'scoped memory for tpu_custom_call.1']
    #allocation5 [shape = 'u8[524288]{0}', space=vmem, size = 0x80000, scoped, tag = 'input window, operand 1']
    #allocation6 [shape = 's32[2]{0}', space=sflag, size = 0x8, scoped, tag = 'scoped memory for tpu_custom_call.1']
    #allocation7 [shape = 'u8[2048]{0}', space=vmem, size = 0x800, scoped, tag = 'input window, operand 2']
    #allocation8 [shape = 'u8[16384]{0}', space=vmem, size = 0x4000, scoped, tag = 'output window, operand 0']
    %8 = vsyncpa [#allocation3], 0
    %9 = vsyncpa [#allocation6], 0
    %s10 = scalar_lea.sflag [#allocation6], 1
    %11 = vsyncpa %s10, 0
    %12 = vsyncpa [#allocation4], 0
    %s13 = scalar_lea.sflag [#allocation4], 1
    %14 = vsyncpa %s13, 0
    loop: start=0, step=1, limit=4
    $region2: #{tpu_custom_call.1} parent=1 // loop_pre_header
      _
    $region3: #{tpu_custom_call.1} parent=1 // loop_header
      %s16 = sphi 0, %s20
      %p17 = scmp.ge.s32.totalorder %s16, 4
      %s24 = sphi 0, %s24
      %s26 = sphi 0, %s24
      %s27 = sphi 0, %s26
      %s41 = sphi 0, %s27
      %s47 = sphi 0, %s49
      %s50 = sphi 0, %s47
      %s51 = sphi 0, %s50
      %s67 = sphi 0, %s51
      %s73 = sphi 0, %s75
      %s76 = sphi 0, %s73
      %s77 = sphi 0, %s76
      %s93 = sphi 0, %s77
      %s99 = sphi 0, %s101
      %s102 = sphi 0, %s99
      %s103 = sphi 0, %s102
      %s119 = sphi 0, %s103
    $region4: #{tpu_custom_call.1} parent=1 // loop_header_branch
      %19 = sbr.rel (%p17) target = $region8
    $region5: #{tpu_custom_call.1} parent=1 // loop_body
      %s21 = ssub.s32 %s16, 1
      %s22 = ssub.s32 %s16, 2
      %s23 = sadd.s32 %s16, 1
      %s25 = sadd.s32 %s24, 1
      %p28 = scmp.eq.s32.totalorder %s16, 1
      %p29 = scmp.ne.s32.totalorder %s24, %s26
      %p30 = scmp.eq.s32.totalorder %s16, 0
      %p31 = por %p29, %p30
      %p32 = scmp.ne.s32.totalorder %s24, %s26
      %p33 = scmp.eq.s32.totalorder %s21, 1
      %p34 = por %p32, %p33
      %p35 = scmp.ne.s32.totalorder %s26, %s27
      %p36 = scmp.eq.s32.totalorder %s21, 0
      %p37 = por %p35, %p36
      %p38 = scmp.ne.s32.totalorder %s26, %s27
      %p39 = scmp.eq.s32.totalorder %s22, 1
      %p40 = por %p38, %p39
      %p42 = scmp.ne.s32.totalorder %s27, %s41
      %p43 = scmp.eq.s32.totalorder %s22, 0
      %p44 = por %p42, %p43
      %s45 = ssub.s32 %s16, %s23
      %p46 = scmp.eq.s32.totalorder %s45, 0
      %s48 = sadd.s32 %s47, 1
      %s49 = scalar_select %p46, %s47, %s48
      %p52 = pneg %p46
      %p53 = scmp.eq.s32.totalorder %s16, 1
      %p54 = por %p52, %p53
      %p55 = scmp.ne.s32.totalorder %s47, %s50
      %p56 = scmp.eq.s32.totalorder %s16, 0
      %p57 = por %p55, %p56
      %p58 = scmp.ne.s32.totalorder %s47, %s50
      %p59 = scmp.eq.s32.totalorder %s21, 1
      %p60 = por %p58, %p59
      %p61 = scmp.ne.s32.totalorder %s50, %s51
      %p62 = scmp.eq.s32.totalorder %s21, 0
      %p63 = por %p61, %p62
      %p64 = scmp.ne.s32.totalorder %s50, %s51
      %p65 = scmp.eq.s32.totalorder %s22, 1
      %p66 = por %p64, %p65
      %p68 = scmp.ne.s32.totalorder %s51, %s67
      %p69 = scmp.eq.s32.totalorder %s22, 0
      %p70 = por %p68, %p69
      %s71 = ssub.s32 %s16, %s23
      %p72 = scmp.eq.s32.totalorder %s71, 0
      %s74 = sadd.s32 %s73, 1
      %s75 = scalar_select %p72, %s73, %s74
      %p78 = pneg %p72
      %p79 = scmp.eq.s32.totalorder %s16, 1
      %p80 = por %p78, %p79
      %p81 = scmp.ne.s32.totalorder %s73, %s76
      %p82 = scmp.eq.s32.totalorder %s16, 0
      %p83 = por %p81, %p82
      %p84 = scmp.ne.s32.totalorder %s73, %s76
      %p85 = scmp.eq.s32.totalorder %s21, 1
      %p86 = por %p84, %p85
      %p87 = scmp.ne.s32.totalorder %s76, %s77
      %p88 = scmp.eq.s32.totalorder %s21, 0
      %p89 = por %p87, %p88
      %p90 = scmp.ne.s32.totalorder %s76, %s77
      %p91 = scmp.eq.s32.totalorder %s22, 1
      %p92 = por %p90, %p91
      %p94 = scmp.ne.s32.totalorder %s77, %s93
      %p95 = scmp.eq.s32.totalorder %s22, 0
      %p96 = por %p94, %p95
      %s97 = ssub.s32 %s16, %s23
      %p98 = scmp.eq.s32.totalorder %s97, 0
      %s100 = sadd.s32 %s99, 1
      %s101 = scalar_select %p98, %s99, %s100
      %p104 = pneg %p98
      %p105 = scmp.eq.s32.totalorder %s16, 1
      %p106 = por %p104, %p105
      %p107 = scmp.ne.s32.totalorder %s99, %s102
      %p108 = scmp.eq.s32.totalorder %s16, 0
      %p109 = por %p107, %p108
      %p110 = scmp.ne.s32.totalorder %s99, %s102
      %p111 = scmp.eq.s32.totalorder %s21, 1
      %p112 = por %p110, %p111
      %p113 = scmp.ne.s32.totalorder %s102, %s103
      %p114 = scmp.eq.s32.totalorder %s21, 0
      %p115 = por %p113, %p114
      %p116 = scmp.ne.s32.totalorder %s102, %s103
      %p117 = scmp.eq.s32.totalorder %s22, 1
      %p118 = por %p116, %p117
      %p120 = scmp.ne.s32.totalorder %s103, %s119
      %p121 = scmp.eq.s32.totalorder %s22, 0
      %p122 = por %p120, %p121
      %p123 = scmp.le.s32.totalorder 1, %s16
      %p124 = scmp.lt.s32.totalorder %s16, 3
      %p125 = pnand %p123, %p124
      %p126 = pneg %p125
      // Predicated region
      $region9: #{tpu_custom_call.1} parent=5 // pred_check
        _
      $region10: #{tpu_custom_call.1} parent=5 // pred_check_branch
        %128 = sbr.rel (%p125) target = $region12
      $region11: #{tpu_custom_call.1} parent=5 // pred_region
        %s129 = ssub.s32 %s16, 1
        // Predicated region
        $region13: #{tpu_custom_call.1} parent=11 // pred_check
          %p130 = pneg %p37
        $region14: #{tpu_custom_call.1} parent=11 // pred_check_branch
          %132 = sbr.rel (%p130) target = $region16
        $region15: #{tpu_custom_call.1} parent=11 // pred_region
          %s134 = ssub.s32 512, 512
          %135 = vsyncadd [#allocation3], %s134
          %s137 = sshll.u32 [#allocation2], 4
          %s138 = int_to_ptr.vmem [resolvable:$true] %s137
          %140 = dma.hbm_to_vmem [thread:$0]  %s0, 512, %s138, [#allocation3]
        $region16: #{tpu_custom_call.1} parent=11 // pred_fallthru
          _
      $region12: #{tpu_custom_call.1} parent=5 // pred_fallthru
        _
      %p141 = scmp.lt.s32.totalorder %s16, 2
      // Predicated region
      $region17: #{tpu_custom_call.1} parent=5 // pred_check
        %p142 = pneg %p141
      $region18: #{tpu_custom_call.1} parent=5 // pred_check_branch
        %144 = sbr.rel (%p142) target = $region20
      $region19: #{tpu_custom_call.1} parent=5 // pred_region
        // Predicated region
        $region21: #{tpu_custom_call.1} parent=19 // pred_check
          %p145 = pneg %p57
        $region22: #{tpu_custom_call.1} parent=19 // pred_check_branch
          %147 = sbr.rel (%p145) target = $region24
        $region23: #{tpu_custom_call.1} parent=19 // pred_region
          %s148 = sand.u32 %s16, 1
          %s149 = scalar_lea.sflag [#allocation6], %s148
          %s150 = sand.u32 %s47, 1
          %s151 = smul.addr %s150, 512
          %s152 = scalar_lea.vmem [#allocation5], %s151
          %s153 = smul.u32 32, %s16
          %s155 = ssub.s32 8192, 8192
          %156 = vsyncadd %s149, %s155
          %s157 = smul.addr %s153, 4
          %s158 = smul.addr %s157, 64
          %s159 = scalar_lea.hbm %s1, %s158
          %s160 = sshll.u32 %s152, 4
          %s161 = int_to_ptr.vmem [resolvable:$true] %s160
          %166 = dma.hbm_to_vmem [thread:$0]  %s159, 8192, %s161, %s149, 256, 256, 16
        $region24: #{tpu_custom_call.1} parent=19 // pred_fallthru
          _
        // Predicated region
        $region25: #{tpu_custom_call.1} parent=19 // pred_check
          %p167 = pneg %p83
        $region26: #{tpu_custom_call.1} parent=19 // pred_check_branch
          %169 = sbr.rel (%p167) target = $region28
        $region27: #{tpu_custom_call.1} parent=19 // pred_region
          %s170 = sand.u32 %s16, 1
          %s171 = scalar_lea.sflag [#allocation6], %s170
          %s172 = sand.u32 %s73, 1
          %s173 = smul.addr %s172, 2
          %s174 = scalar_lea.vmem [#allocation7], %s173
          %s175 = smul.u32 2, %s16
          %s177 = ssub.s32 32, 32
          %178 = vsyncadd %s171, %s177
          %s179 = smul.addr %s175, 16
          %s180 = scalar_lea.hbm %s2, %s179
          %s182 = sshll.u32 %s174, 4
          %s183 = int_to_ptr.vmem [resolvable:$true] %s182
          %185 = dma.hbm_to_vmem [thread:$0]  %s180, 32, %s183, %s171
        $region28: #{tpu_custom_call.1} parent=19 // pred_fallthru
          _
      $region20: #{tpu_custom_call.1} parent=5 // pred_fallthru
        _
      %p186 = scmp.le.s32.totalorder 1, %s16
      %p187 = scmp.lt.s32.totalorder %s16, 3
      %p188 = pnand %p186, %p187
      %p189 = pneg %p188
      // Predicated region
      $region29: #{tpu_custom_call.1} parent=5 // pred_check
        _
      $region30: #{tpu_custom_call.1} parent=5 // pred_check_branch
        %191 = sbr.rel (%p188) target = $region32
      $region31: #{tpu_custom_call.1} parent=5 // pred_region
        %s192 = ssub.s32 %s16, 1
        // Predicated region
        $region33: #{tpu_custom_call.1} parent=31 // pred_check
          %p193 = pneg %p37
        $region34: #{tpu_custom_call.1} parent=31 // pred_check_branch
          %195 = sbr.rel (%p193) target = $region36
        $region35: #{tpu_custom_call.1} parent=31 // pred_region
          %196 = dma.done [#allocation3], 512
        $region36: #{tpu_custom_call.1} parent=31 // pred_fallthru
          _
        %s197 = sand.u32 %s21, 1
        %s198 = scalar_lea.sflag [#allocation6], %s197
        %s199 = sand.u32 %s50, 1
        %s200 = smul.addr %s199, 512
        %s201 = scalar_lea.vmem [#allocation5], %s200
        // Predicated region
        $region37: #{tpu_custom_call.1} parent=31 // pred_check
          %p202 = pneg %p63
        $region38: #{tpu_custom_call.1} parent=31 // pred_check_branch
          %204 = sbr.rel (%p202) target = $region40
        $region39: #{tpu_custom_call.1} parent=31 // pred_region
          %205 = dma.done %s198, 8192
        $region40: #{tpu_custom_call.1} parent=31 // pred_fallthru
          _
        %s206 = sand.u32 %s21, 1
        %s207 = scalar_lea.sflag [#allocation6], %s206
        %s208 = sand.u32 %s76, 1
        %s209 = smul.addr %s208, 2
        %s210 = scalar_lea.vmem [#allocation7], %s209
        // Predicated region
        $region41: #{tpu_custom_call.1} parent=31 // pred_check
          %p211 = pneg %p89
        $region42: #{tpu_custom_call.1} parent=31 // pred_check_branch
          %213 = sbr.rel (%p211) target = $region44
        $region43: #{tpu_custom_call.1} parent=31 // pred_region
          %214 = dma.done %s207, 32
        $region44: #{tpu_custom_call.1} parent=31 // pred_fallthru
          _
        %p215 = pneg %p37
        %p216 = pneg %p34
        %s217 = sand.u32 %s21, 1
        %s218 = scalar_lea.sflag [#allocation6], %s217
        %s219 = sand.u32 %s50, 1
        %s220 = smul.addr %s219, 512
        %s221 = scalar_lea.vmem [#allocation5], %s220
        %p222 = pneg %p63
        %p223 = pneg %p60
        %s224 = sand.u32 %s21, 1
        %s225 = scalar_lea.sflag [#allocation6], %s224
        %s226 = sand.u32 %s76, 1
        %s227 = smul.addr %s226, 2
        %s228 = scalar_lea.vmem [#allocation7], %s227
        %p229 = pneg %p89
        %p230 = pneg %p86
        %p231 = pneg %p115
        %p232 = pneg %p112
        %s233 = sand.u32 %s102, 1
        %s234 = scalar_lea.sflag [#allocation4], %s233
        %s235 = sand.u32 %s102, 1
        %s236 = smul.addr %s235, 16
        %s237 = scalar_lea.vmem [#allocation8], %s236
        %s238 = smul.u32 32, %s21
        %s239 = smul.u32 2, %s21
        %s240 = smul.u32 2, %s21
        %v241 = vld [vmem:[#allocation2] sm:$0xff]
        %v242 = vld [vmem:[#allocation2 + $0x8] sm:$0xff]
        %v243 = vld [vmem:[#allocation2 + $0x10] sm:$0xff]
        %v244 = vld [vmem:[#allocation2 + $0x18] sm:$0xff]
        %v245 = vpack.c.bf16 %v241, %v241
        %v246 = vpack.c.bf16 %v242, %v242
        %v247 = vpack.c.bf16 %v243, %v243
        %v248 = vpack.c.bf16 %v244, %v244
        %v249 = vld [vmem:[%s201] sm:$0xff]
        %v250 = vld [vmem:[%s201 + $0x8] sm:$0xff]
        %v251 = vld [vmem:[%s201 + $0x10] sm:$0xff]
        %v252 = vld [vmem:[%s201 + $0x18] sm:$0xff]
        %v253 = vld [vmem:[%s201 + $0x20] sm:$0xff]
        %v254 = vld [vmem:[%s201 + $0x28] sm:$0xff]
        %v255 = vld [vmem:[%s201 + $0x30] sm:$0xff]
        %v256 = vld [vmem:[%s201 + $0x38] sm:$0xff]
        %v257 = vld [vmem:[%s201 + $0x40] sm:$0xff]
        %v258 = vld [vmem:[%s201 + $0x48] sm:$0xff]
        %v259 = vld [vmem:[%s201 + $0x50] sm:$0xff]
        %v260 = vld [vmem:[%s201 + $0x58] sm:$0xff]
        %v261 = vld [vmem:[%s201 + $0x60] sm:$0xff]
        %v262 = vld [vmem:[%s201 + $0x68] sm:$0xff]
        %v263 = vld [vmem:[%s201 + $0x70] sm:$0xff]
        %v264 = vld [vmem:[%s201 + $0x78] sm:$0xff]
        %v265 = vld [vmem:[%s201 + $0x80] sm:$0xff]
        %v266 = vld [vmem:[%s201 + $0x88] sm:$0xff]
        %v267 = vld [vmem:[%s201 + $0x90] sm:$0xff]
        %v268 = vld [vmem:[%s201 + $0x98] sm:$0xff]
        %v269 = vld [vmem:[%s201 + $0xa0] sm:$0xff]
        %v270 = vld [vmem:[%s201 + $0xa8] sm:$0xff]
        %v271 = vld [vmem:[%s201 + $0xb0] sm:$0xff]
        %v272 = vld [vmem:[%s201 + $0xb8] sm:$0xff]
        %v273 = vld [vmem:[%s201 + $0xc0] sm:$0xff]
        %v274 = vld [vmem:[%s201 + $0xc8] sm:$0xff]
        %v275 = vld [vmem:[%s201 + $0xd0] sm:$0xff]
        %v276 = vld [vmem:[%s201 + $0xd8] sm:$0xff]
        %v277 = vld [vmem:[%s201 + $0xe0] sm:$0xff]
        %v278 = vld [vmem:[%s201 + $0xe8] sm:$0xff]
        %v279 = vld [vmem:[%s201 + $0xf0] sm:$0xff]
        %v280 = vld [vmem:[%s201 + $0xf8] sm:$0xff]
        %v281 = vld [vmem:[%s201 + $0x100] sm:$0xff]
        %v282 = vld [vmem:[%s201 + $0x108] sm:$0xff]
        %v283 = vld [vmem:[%s201 + $0x110] sm:$0xff]
        %v284 = vld [vmem:[%s201 + $0x118] sm:$0xff]
        %v285 = vld [vmem:[%s201 + $0x120] sm:$0xff]
        %v286 = vld [vmem:[%s201 + $0x128] sm:$0xff]
        %v287 = vld [vmem:[%s201 + $0x130] sm:$0xff]
        %v288 = vld [vmem:[%s201 + $0x138] sm:$0xff]
        %v289 = vld [vmem:[%s201 + $0x140] sm:$0xff]
        %v290 = vld [vmem:[%s201 + $0x148] sm:$0xff]
        %v291 = vld [vmem:[%s201 + $0x150] sm:$0xff]
        %v292 = vld [vmem:[%s201 + $0x158] sm:$0xff]
        %v293 = vld [vmem:[%s201 + $0x160] sm:$0xff]
        %v294 = vld [vmem:[%s201 + $0x168] sm:$0xff]
        %v295 = vld [vmem:[%s201 + $0x170] sm:$0xff]
        %v296 = vld [vmem:[%s201 + $0x178] sm:$0xff]
        %v297 = vld [vmem:[%s201 + $0x180] sm:$0xff]
        %v298 = vld [vmem:[%s201 + $0x188] sm:$0xff]
        %v299 = vld [vmem:[%s201 + $0x190] sm:$0xff]
        %v300 = vld [vmem:[%s201 + $0x198] sm:$0xff]
        %v301 = vld [vmem:[%s201 + $0x1a0] sm:$0xff]
        %v302 = vld [vmem:[%s201 + $0x1a8] sm:$0xff]
        %v303 = vld [vmem:[%s201 + $0x1b0] sm:$0xff]
        %v304 = vld [vmem:[%s201 + $0x1b8] sm:$0xff]
        %v305 = vld [vmem:[%s201 + $0x1c0] sm:$0xff]
        %v306 = vld [vmem:[%s201 + $0x1c8] sm:$0xff]
        %v307 = vld [vmem:[%s201 + $0x1d0] sm:$0xff]
        %v308 = vld [vmem:[%s201 + $0x1d8] sm:$0xff]
        %v309 = vld [vmem:[%s201 + $0x1e0] sm:$0xff]
        %v310 = vld [vmem:[%s201 + $0x1e8] sm:$0xff]
        %v311 = vld [vmem:[%s201 + $0x1f0] sm:$0xff]
        %v312 = vld [vmem:[%s201 + $0x1f8] sm:$0xff]
        %v313 = vld [vmem:[%s210] sm:$0x3]
        %v315 = vlaneseq
        %v316 = vshrl.u32 %v315, 7
        %v317 = vsub.s32 0, %v316
        %v318 = vrot.slane %v313, %v317
        %v319 = vlaneseq
        %v320 = vshrl.u32 %v319, 7
        %v321 = vsub.s32 1, %v320
        %v322 = vrot.slane %v313, %v321
        %v389 = vunpack.c.l.b16 %v249
        %v390 = vunpack.c.h.b16 %v249
        %v391 = vunpack.c.l.b16 %v250
        %v392 = vunpack.c.h.b16 %v250
        %v393 = vunpack.c.l.b16 %v251
        %v394 = vunpack.c.h.b16 %v251
        %v395 = vunpack.c.l.b16 %v252
        %v396 = vunpack.c.h.b16 %v252
        %v397 = vunpack.c.l.b16 %v253
        %v398 = vunpack.c.h.b16 %v253
        %v399 = vunpack.c.l.b16 %v254
        %v400 = vunpack.c.h.b16 %v254
        %v401 = vunpack.c.l.b16 %v255
        %v402 = vunpack.c.h.b16 %v255
        %v403 = vunpack.c.l.b16 %v256
        %v404 = vunpack.c.h.b16 %v256
        %v405 = vunpack.c.l.b16 %v257
        %v406 = vunpack.c.h.b16 %v257
        %v407 = vunpack.c.l.b16 %v258
        %v408 = vunpack.c.h.b16 %v258
        %v409 = vunpack.c.l.b16 %v259
        %v410 = vunpack.c.h.b16 %v259
        %v411 = vunpack.c.l.b16 %v260
        %v412 = vunpack.c.h.b16 %v260
        %v413 = vunpack.c.l.b16 %v261
        %v414 = vunpack.c.h.b16 %v261
        %v415 = vunpack.c.l.b16 %v262
        %v416 = vunpack.c.h.b16 %v262
        %v417 = vunpack.c.l.b16 %v263
        %v418 = vunpack.c.h.b16 %v263
        %v419 = vunpack.c.l.b16 %v264
        %v420 = vunpack.c.h.b16 %v264
        %v421 = vunpack.c.l.b16 %v265
        %v422 = vunpack.c.h.b16 %v265
        %v423 = vunpack.c.l.b16 %v266
        %v424 = vunpack.c.h.b16 %v266
        %v425 = vunpack.c.l.b16 %v267
        %v426 = vunpack.c.h.b16 %v267
        %v427 = vunpack.c.l.b16 %v268
        %v428 = vunpack.c.h.b16 %v268
        %v429 = vunpack.c.l.b16 %v269
        %v430 = vunpack.c.h.b16 %v269
        %v431 = vunpack.c.l.b16 %v270
        %v432 = vunpack.c.h.b16 %v270
        %v433 = vunpack.c.l.b16 %v271
        %v434 = vunpack.c.h.b16 %v271
        %v435 = vunpack.c.l.b16 %v272
        %v436 = vunpack.c.h.b16 %v272
        %v437 = vunpack.c.l.b16 %v273
        %v438 = vunpack.c.h.b16 %v273
        %v439 = vunpack.c.l.b16 %v274
        %v440 = vunpack.c.h.b16 %v274
        %v441 = vunpack.c.l.b16 %v275
        %v442 = vunpack.c.h.b16 %v275
        %v443 = vunpack.c.l.b16 %v276
        %v444 = vunpack.c.h.b16 %v276
        %v445 = vunpack.c.l.b16 %v277
        %v446 = vunpack.c.h.b16 %v277
        %v447 = vunpack.c.l.b16 %v278
        %v448 = vunpack.c.h.b16 %v278
        %v449 = vunpack.c.l.b16 %v279
        %v450 = vunpack.c.h.b16 %v279
        %v451 = vunpack.c.l.b16 %v280
        %v452 = vunpack.c.h.b16 %v280
        %v453 = vunpack.c.l.b16 %v281
        %v454 = vunpack.c.h.b16 %v281
        %v455 = vunpack.c.l.b16 %v282
        %v456 = vunpack.c.h.b16 %v282
        %v457 = vunpack.c.l.b16 %v283
        %v458 = vunpack.c.h.b16 %v283
        %v459 = vunpack.c.l.b16 %v284
        %v460 = vunpack.c.h.b16 %v284
        %v461 = vunpack.c.l.b16 %v285
        %v462 = vunpack.c.h.b16 %v285
        %v463 = vunpack.c.l.b16 %v286
        %v464 = vunpack.c.h.b16 %v286
        %v465 = vunpack.c.l.b16 %v287
        %v466 = vunpack.c.h.b16 %v287
        %v467 = vunpack.c.l.b16 %v288
        %v468 = vunpack.c.h.b16 %v288
        %v469 = vunpack.c.l.b16 %v289
        %v470 = vunpack.c.h.b16 %v289
        %v471 = vunpack.c.l.b16 %v290
        %v472 = vunpack.c.h.b16 %v290
        %v473 = vunpack.c.l.b16 %v291
        %v474 = vunpack.c.h.b16 %v291
        %v475 = vunpack.c.l.b16 %v292
        %v476 = vunpack.c.h.b16 %v292
        %v477 = vunpack.c.l.b16 %v293
        %v478 = vunpack.c.h.b16 %v293
        %v479 = vunpack.c.l.b16 %v294
        %v480 = vunpack.c.h.b16 %v294
        %v481 = vunpack.c.l.b16 %v295
        %v482 = vunpack.c.h.b16 %v295
        %v483 = vunpack.c.l.b16 %v296
        %v484 = vunpack.c.h.b16 %v296
        %v485 = vunpack.c.l.b16 %v297
        %v486 = vunpack.c.h.b16 %v297
        %v487 = vunpack.c.l.b16 %v298
        %v488 = vunpack.c.h.b16 %v298
        %v489 = vunpack.c.l.b16 %v299
        %v490 = vunpack.c.h.b16 %v299
        %v491 = vunpack.c.l.b16 %v300
        %v492 = vunpack.c.h.b16 %v300
        %v493 = vunpack.c.l.b16 %v301
        %v494 = vunpack.c.h.b16 %v301
        %v495 = vunpack.c.l.b16 %v302
        %v496 = vunpack.c.h.b16 %v302
        %v497 = vunpack.c.l.b16 %v303
        %v498 = vunpack.c.h.b16 %v303
        %v499 = vunpack.c.l.b16 %v304
        %v500 = vunpack.c.h.b16 %v304
        %v501 = vunpack.c.l.b16 %v305
        %v502 = vunpack.c.h.b16 %v305
        %v503 = vunpack.c.l.b16 %v306
        %v504 = vunpack.c.h.b16 %v306
        %v505 = vunpack.c.l.b16 %v307
        %v506 = vunpack.c.h.b16 %v307
        %v507 = vunpack.c.l.b16 %v308
        %v508 = vunpack.c.h.b16 %v308
        %v509 = vunpack.c.l.b16 %v309
        %v510 = vunpack.c.h.b16 %v309
        %v511 = vunpack.c.l.b16 %v310
        %v512 = vunpack.c.h.b16 %v310
        %v513 = vunpack.c.l.b16 %v311
        %v514 = vunpack.c.h.b16 %v311
        %v515 = vunpack.c.l.b16 %v312
        %v516 = vunpack.c.h.b16 %v312
        %v517 = vpack.c.b16 %v393, %v389
        %v518 = vpack.c.b16 %v394, %v390
        %v519 = vpack.c.b16 %v395, %v391
        %v520 = vpack.c.b16 %v396, %v392
        %v521 = vpack.c.b16 %v401, %v397
        %v522 = vpack.c.b16 %v402, %v398
        %v523 = vpack.c.b16 %v403, %v399
        %v524 = vpack.c.b16 %v404, %v400
        %v525 = vpack.c.b16 %v409, %v405
        %v526 = vpack.c.b16 %v410, %v406
        %v527 = vpack.c.b16 %v411, %v407
        %v528 = vpack.c.b16 %v412, %v408
        %v529 = vpack.c.b16 %v417, %v413
        %v530 = vpack.c.b16 %v418, %v414
        %v531 = vpack.c.b16 %v419, %v415
        %v532 = vpack.c.b16 %v420, %v416
        %v533 = vpack.c.b16 %v425, %v421
        %v534 = vpack.c.b16 %v426, %v422
        %v535 = vpack.c.b16 %v427, %v423
        %v536 = vpack.c.b16 %v428, %v424
        %v537 = vpack.c.b16 %v433, %v429
        %v538 = vpack.c.b16 %v434, %v430
        %v539 = vpack.c.b16 %v435, %v431
        %v540 = vpack.c.b16 %v436, %v432
        %v541 = vpack.c.b16 %v441, %v437
        %v542 = vpack.c.b16 %v442, %v438
        %v543 = vpack.c.b16 %v443, %v439
        %v544 = vpack.c.b16 %v444, %v440
        %v545 = vpack.c.b16 %v449, %v445
        %v546 = vpack.c.b16 %v450, %v446
        %v547 = vpack.c.b16 %v451, %v447
        %v548 = vpack.c.b16 %v452, %v448
        %v549 = vpack.c.b16 %v457, %v453
        %v550 = vpack.c.b16 %v458, %v454
        %v551 = vpack.c.b16 %v459, %v455
        %v552 = vpack.c.b16 %v460, %v456
        %v553 = vpack.c.b16 %v465, %v461
        %v554 = vpack.c.b16 %v466, %v462
        %v555 = vpack.c.b16 %v467, %v463
        %v556 = vpack.c.b16 %v468, %v464
        %v557 = vpack.c.b16 %v473, %v469
        %v558 = vpack.c.b16 %v474, %v470
        %v559 = vpack.c.b16 %v475, %v471
        %v560 = vpack.c.b16 %v476, %v472
        %v561 = vpack.c.b16 %v481, %v477
        %v562 = vpack.c.b16 %v482, %v478
        %v563 = vpack.c.b16 %v483, %v479
        %v564 = vpack.c.b16 %v484, %v480
        %v565 = vpack.c.b16 %v489, %v485
        %v566 = vpack.c.b16 %v490, %v486
        %v567 = vpack.c.b16 %v491, %v487
        %v568 = vpack.c.b16 %v492, %v488
        %v569 = vpack.c.b16 %v497, %v493
        %v570 = vpack.c.b16 %v498, %v494
        %v571 = vpack.c.b16 %v499, %v495
        %v572 = vpack.c.b16 %v500, %v496
        %v573 = vpack.c.b16 %v505, %v501
        %v574 = vpack.c.b16 %v506, %v502
        %v575 = vpack.c.b16 %v507, %v503
        %v576 = vpack.c.b16 %v508, %v504
        %v577 = vpack.c.b16 %v513, %v509
        %v578 = vpack.c.b16 %v514, %v510
        %v579 = vpack.c.b16 %v515, %v511
        %v580 = vpack.c.b16 %v516, %v512
        %645 = vmatprep.subr.bf16.mxu0 %v546
        %646 = vmatpush1.bf16.xpose.msra.mxu0 %v545
        %647 = vmatprep.subr.bf16.mxu0 %v542
        %648 = vmatpush1.bf16.xpose.msra.mxu0 %v541
        %649 = vmatprep.subr.bf16.mxu0 %v538
        %650 = vmatpush1.bf16.xpose.msra.mxu0 %v537
        %651 = vmatprep.subr.bf16.mxu0 %v534
        %652 = vmatpush1.bf16.xpose.msra.mxu0 %v533
        %653 = vmatprep.subr.bf16.mxu0 %v530
        %654 = vmatpush1.bf16.xpose.msra.mxu0 %v529
        %655 = vmatprep.subr.bf16.mxu0 %v526
        %656 = vmatpush1.bf16.xpose.msra.mxu0 %v525
        %657 = vmatprep.subr.bf16.mxu0 %v522
        %658 = vmatpush1.bf16.xpose.msra.mxu0 %v521
        %659 = vmatprep.subr.bf16.mxu0 %v518
        %660 = vmatpush1.bf16.xpose.msra.mxu0 %v517
        %661 = vmatprep.subr.bf16.mxu0 %v578
        %662 = vmatpush2.bf16.xpose.msra.mxu0 %v577
        %663 = vmatprep.subr.bf16.mxu0 %v574
        %664 = vmatpush2.bf16.xpose.msra.mxu0 %v573
        %665 = vmatprep.subr.bf16.mxu0 %v570
        %666 = vmatpush2.bf16.xpose.msra.mxu0 %v569
        %667 = vmatprep.subr.bf16.mxu0 %v566
        %668 = vmatpush2.bf16.xpose.msra.mxu0 %v565
        %669 = vmatprep.subr.bf16.mxu0 %v562
        %670 = vmatpush2.bf16.xpose.msra.mxu0 %v561
        %671 = vmatprep.subr.bf16.mxu0 %v558
        %672 = vmatpush2.bf16.xpose.msra.mxu0 %v557
        %673 = vmatprep.subr.bf16.mxu0 %v554
        %674 = vmatpush2.bf16.xpose.msra.mxu0 %v553
        %675 = vmatprep.subr.bf16.mxu0 %v550
        %676 = vmatpush2.bf16.xpose.msra.mxu0 %v549
        %677 = vmatprep.mubr.bf16.mxu0 %v246
        %678 = vmatmul.mubr.bf16.gmra.mxu0 %v245
        %v679 = vpop.f32.mrf.mxu0
        %v680 = vadd.f32 %v318, %v679
        %v681 = vpop.f32.mrf.mxu0
        %v682 = vadd.f32 %v322, %v681
        %v683 = vpop.f32.mrf.mxu0
        %v684 = vpop.f32.mrf.mxu0
        %685 = vdwg.mxu0
        %686 = vmatprep.subr.bf16.mxu0 %v548
        %687 = vmatpush1.bf16.xpose.msra.mxu0 %v547
        %688 = vmatprep.subr.bf16.mxu0 %v544
        %689 = vmatpush1.bf16.xpose.msra.mxu0 %v543
        %690 = vmatprep.subr.bf16.mxu0 %v540
        %691 = vmatpush1.bf16.xpose.msra.mxu0 %v539
        %692 = vmatprep.subr.bf16.mxu0 %v536
        %693 = vmatpush1.bf16.xpose.msra.mxu0 %v535
        %694 = vmatprep.subr.bf16.mxu0 %v532
        %695 = vmatpush1.bf16.xpose.msra.mxu0 %v531
        %696 = vmatprep.subr.bf16.mxu0 %v528
        %697 = vmatpush1.bf16.xpose.msra.mxu0 %v527
        %698 = vmatprep.subr.bf16.mxu0 %v524
        %699 = vmatpush1.bf16.xpose.msra.mxu0 %v523
        %700 = vmatprep.subr.bf16.mxu0 %v520
        %701 = vmatpush1.bf16.xpose.msra.mxu0 %v519
        %702 = vmatprep.subr.bf16.mxu0 %v580
        %703 = vmatpush2.bf16.xpose.msra.mxu0 %v579
        %704 = vmatprep.subr.bf16.mxu0 %v576
        %705 = vmatpush2.bf16.xpose.msra.mxu0 %v575
        %706 = vmatprep.subr.bf16.mxu0 %v572
        %707 = vmatpush2.bf16.xpose.msra.mxu0 %v571
        %708 = vmatprep.subr.bf16.mxu0 %v568
        %709 = vmatpush2.bf16.xpose.msra.mxu0 %v567
        %710 = vmatprep.subr.bf16.mxu0 %v564
        %711 = vmatpush2.bf16.xpose.msra.mxu0 %v563
        %712 = vmatprep.subr.bf16.mxu0 %v560
        %713 = vmatpush2.bf16.xpose.msra.mxu0 %v559
        %714 = vmatprep.subr.bf16.mxu0 %v556
        %715 = vmatpush2.bf16.xpose.msra.mxu0 %v555
        %716 = vmatprep.subr.bf16.mxu0 %v552
        %717 = vmatpush2.bf16.xpose.msra.mxu0 %v551
        %718 = vmatprep.mubr.bf16.mxu0 %v248
        %719 = vmatmul.mubr.bf16.gmra.mxu0 %v247
        %v720 = vpop.f32.mrf.mxu0
        %v721 = vadd.f32 %v680, %v720
        %v722 = vpop.f32.mrf.mxu0
        %v723 = vadd.f32 %v682, %v722
        %v724 = vpop.f32.mrf.mxu0
        %v725 = vpop.f32.mrf.mxu0
        %726 = vdwg.mxu0
        %v727 = vmax.f32 %v721, 0.0
        %v728 = vmax.f32 %v723, 0.0
        %729 = vst [vmem:[%s237] sm:$0xff] %v727
        %730 = vst [vmem:[%s237 + $0x8] sm:$0xff] %v728
        %s731 = sand.u32 %s102, 1
        %s732 = scalar_lea.sflag [#allocation4], %s731
        %s733 = sand.u32 %s102, 1
        %s734 = smul.addr %s733, 16
        %s735 = scalar_lea.vmem [#allocation8], %s734
        // Predicated region
        $region45: #{tpu_custom_call.1} parent=31 // pred_check
          %p736 = pneg %p112
        $region46: #{tpu_custom_call.1} parent=31 // pred_check_branch
          %738 = sbr.rel (%p736) target = $region48
        $region47: #{tpu_custom_call.1} parent=31 // pred_region
          %s739 = smul.u32 2, %s21
          %s741 = ssub.s32 256, 256
          %742 = vsyncadd %s732, %s741
          %s743 = smul.addr %s739, 128
          %s744 = scalar_lea.hbm %s3, %s743
          %s746 = sshll.u32 %s735, 4
          %s747 = int_to_ptr.vmem [resolvable:$true] %s746
          %749 = dma.vmem_to_hbm [thread:$0]  %s747, 256, %s744, %s732
        $region48: #{tpu_custom_call.1} parent=31 // pred_fallthru
          _
      $region32: #{tpu_custom_call.1} parent=5 // pred_fallthru
        _
      %p750 = scmp.le.s32.totalorder 2, %s16
      // Predicated region
      $region49: #{tpu_custom_call.1} parent=5 // pred_check
        %p751 = pneg %p750
      $region50: #{tpu_custom_call.1} parent=5 // pred_check_branch
        %753 = sbr.rel (%p751) target = $region52
      $region51: #{tpu_custom_call.1} parent=5 // pred_region
        %s754 = ssub.s32 %s16, 2
        // Predicated region
        $region53: #{tpu_custom_call.1} parent=51 // pred_check
          %p755 = pneg %p118
        $region54: #{tpu_custom_call.1} parent=51 // pred_check_branch
          %757 = sbr.rel (%p755) target = $region56
        $region55: #{tpu_custom_call.1} parent=51 // pred_region
          %s758 = sand.u32 %s103, 1
          %s759 = scalar_lea.sflag [#allocation4], %s758
          %s760 = sand.u32 %s103, 1
          %s761 = smul.addr %s760, 16
          %s762 = scalar_lea.vmem [#allocation8], %s761
          %763 = dma.done %s759, 256
        $region56: #{tpu_custom_call.1} parent=51 // pred_fallthru
          _
      $region52: #{tpu_custom_call.1} parent=5 // pred_fallthru
        _
    $region6: #{tpu_custom_call.1} parent=1 // loop_footer
      %s20 = sadd.s32 1, %s16
    $region7: #{tpu_custom_call.1} parent=1 // loop_footer_branch
      %15 = sbr.rel target = $region3
    $region8: #{tpu_custom_call.1} parent=1 // loop_exit
      _
    %764 = vsyncpa [#allocation3], 1
    %s765 = scalar_lea.sflag [#allocation3], 1
    %766 = vsyncpa %s765, 1
    %767 = vsyncpa [#allocation6], 1
    %s768 = scalar_lea.sflag [#allocation6], 1
    %769 = vsyncpa %s768, 1
    %770 = vsyncpa [#allocation4], 1
    %s771 = scalar_lea.sflag [#allocation4], 1
    %772 = vsyncpa %s771, 1

</llo_original>
